<compile_context>
chip_gen: v6e
topology: v6e:2x2x1
jax: 0.10.0
libtpu: 0.0.40
codegen_flags: <defaults>
</compile_context>

<pallas_src>
import functools
import math

import numpy as np

import jax
import jax.numpy as jnp
from jax.experimental import pallas as pl
from jax.experimental.pallas import tpu as pltpu


def _round_up(x, m):
    return ((x + m - 1) // m) * m


# ---------------------------------------------------------------------------
# Kernel 1: xw = x @ W   (dense feature transform, row-tiled, fully parallel)
# ---------------------------------------------------------------------------
def _xw_kernel(x_ref, w_ref, o_ref):
    o_ref[...] = jnp.dot(
        x_ref[...], w_ref[...], preferred_element_type=jnp.float32
    )


# ---------------------------------------------------------------------------
# Kernel 2: out = relu(adj @ xw)  (block-sparse, K-tiled matmul + ReLU)
#
# Scalar-prefetch operands (SMEM):
#   counts_ref : (n_row_tiles,)            number of nonzero adj blocks per row tile
#   cols_ref   : (n_row_tiles, max_blocks) column-block indices (tail clamped to the
#                                          last valid index so no extra DMA happens)
# ---------------------------------------------------------------------------
def _spmm_relu_kernel(counts_ref, cols_ref, adj_ref, xw_ref, o_ref, acc_ref):
    i = pl.program_id(0)  # adj / out row tile
    j = pl.program_id(1)  # position in this row tile's nonzero-block list

    @pl.when(j == 0)
    def _():
        acc_ref[...] = jnp.zeros_like(acc_ref)

    # Only accumulate blocks that actually contain nonzeros for this row tile.
    @pl.when(j < counts_ref[i])
    def _():
        acc_ref[...] += jnp.dot(
            adj_ref[...], xw_ref[...], preferred_element_type=jnp.float32
        )

    @pl.when(j == pl.num_programs(1) - 1)
    def _():
        o_ref[...] = jnp.maximum(acc_ref[...], 0.0).astype(o_ref.dtype)


# ---------------------------------------------------------------------------
# Jitted padded implementation (shapes already tile-aligned).
# ---------------------------------------------------------------------------
@functools.partial(jax.jit, static_argnames=("tm", "tk"))
def _gcn_forward_padded(counts, cols, x_p, adj_p, w_p, *, tm, tk):
    n_pad, d = x_p.shape
    f_pad = w_p.shape[1]
    nrt = n_pad // tm
    max_blocks = cols.shape[1]

    # ---- xw = x @ W ----
    xw = pl.pallas_call(
        _xw_kernel,
        out_shape=jax.ShapeDtypeStruct((n_pad, f_pad), jnp.float32),
        grid_spec=pltpu.PrefetchScalarGridSpec(
            num_scalar_prefetch=0,
            grid=(nrt,),
            in_specs=[
                pl.BlockSpec((tm, d), lambda i: (i, 0)),      # x row tile
                pl.BlockSpec((d, f_pad), lambda i: (0, 0)),   # full (small) W
            ],
            out_specs=pl.BlockSpec((tm, f_pad), lambda i: (i, 0)),
        ),
        compiler_params=pltpu.CompilerParams(
            dimension_semantics=("parallel",),
            vmem_limit_bytes=32 * 1024 * 1024,
        ),
    )(x_p, w_p)

    # Match MXU-input dtype of adj (f32 by default; bf16 if caller opted in).
    xw = xw.astype(adj_p.dtype)

    # ---- out = relu(adj @ xw), skipping all-zero adjacency blocks ----
    out = pl.pallas_call(
        _spmm_relu_kernel,
        out_shape=jax.ShapeDtypeStruct((n_pad, f_pad), jnp.float32),
        grid_spec=pltpu.PrefetchScalarGridSpec(
            num_scalar_prefetch=2,
            grid=(nrt, max_blocks),
            in_specs=[
                # adj block (i, cols[i, j]) -- data-dependent column gather.
                pl.BlockSpec((tm, tk), lambda i, j, counts, cols: (i, cols[i, j])),
                # matching xw row block.
                pl.BlockSpec((tk, f_pad), lambda i, j, counts, cols: (cols[i, j], 0)),
            ],
            out_specs=pl.BlockSpec(
                (tm, f_pad), lambda i, j, counts, cols: (i, 0)
            ),
            scratch_shapes=[pltpu.VMEM((tm, f_pad), jnp.float32)],
        ),
        compiler_params=pltpu.CompilerParams(
            # row tiles independent -> parallel (megacore on v7x);
            # block-list axis carries the accumulator -> arbitrary.
            dimension_semantics=("parallel", "arbitrary"),
            vmem_limit_bytes=32 * 1024 * 1024,
        ),
    )(counts, cols, adj_p, xw)

    return out


# ---------------------------------------------------------------------------
# Public wrapper: padding + block-sparsity metadata + unpadding.
# ---------------------------------------------------------------------------
def graph_convolution(x, adj, weight, *, tm=256, tk=256,
                      compute_dtype=jnp.float32):
    """GCN layer forward: returns (relu(adj @ (x @ weight)), adj).

    tm: row tile of adj / out (use 128 on v5e, 256 on v6e/v7x).
    tk: contraction (adj column / xw row) tile, multiple of 128.
    compute_dtype: MXU input dtype for adj/xw (f32 keeps torch-like accuracy;
        bf16 halves HBM traffic on this mem-bound kernel at a precision cost).
    """
    n, d = x.shape
    f = weight.shape[1]
    assert adj.shape == (n, n)
    assert weight.shape[0] == d

    # Lane-dense output: pad F up to a multiple of 128 (zero columns, relu(0)=0).
    f_pad = _round_up(max(f, 128), 128)
    # Pad N so both tm and tk divide it (zero rows/cols contribute nothing).
    n_pad = _round_up(n, math.lcm(tm, tk))

    x_p = jnp.pad(x.astype(jnp.float32), ((0, n_pad - n), (0, 0)))
    adj_p = jnp.pad(adj.astype(jnp.float32), ((0, n_pad - n), (0, n_pad - n)))
    w_p = jnp.pad(weight.astype(jnp.float32), ((0, 0), (0, f_pad - f)))

    # ---- block-sparsity metadata (tiny device reduction + host post-process) ----
    nrt, nct = n_pad // tm, n_pad // tk
    blk_nz = np.asarray(
        jnp.abs(adj_p).reshape(nrt, tm, nct, tk).sum(axis=(1, 3)) > 0
    )
    counts = blk_nz.sum(axis=1).astype(np.int32)            # nonzero blocks / row tile
    max_blocks = max(int(counts.max()), 1)
    cols = np.zeros((nrt, max_blocks), dtype=np.int32)
    for r in range(nrt):
        idx = np.nonzero(blk_nz[r])[0].astype(np.int32)
        if idx.size:
            cols[r, : idx.size] = idx
            cols[r, idx.size:] = idx[-1]   # clamp -> same block revisited, no extra DMA

    adj_in = adj_p.astype(compute_dtype)

    out_p = _gcn_forward_padded(
        jnp.asarray(counts), jnp.asarray(cols), x_p, adj_in, w_p, tm=tm, tk=tk
    )
    return out_p[:n, :f], adj


def _kaiming_normal(key, shape, dtype=jnp.float32):
    # nn.init.kaiming_normal_ default: fan_in mode, gain sqrt(2)
    fan_in = shape[0]
    std = jnp.sqrt(2.0 / fan_in)
    return std * jax.random.normal(key, shape, dtype)


if __name__ == "__main__":
    # Small, deterministic synthetic problem.
    N, INPUT_DIM, OUTPUT_DIM = 128, 64, 32

    key = jax.random.PRNGKey(0)
    kx, ka, kw = jax.random.split(key, 3)

    x = jax.random.normal(kx, (N, INPUT_DIM), dtype=jnp.float32)

    # Dense stand-in for the (sparse) normalized adjacency matrix.
    adj_raw = (jax.random.uniform(ka, (N, N)) < 0.05).astype(jnp.float32)
    adj_raw = adj_raw + jnp.eye(N, dtype=jnp.float32)          # self loops
    deg = jnp.sum(adj_raw, axis=1, keepdims=True)
    adj = adj_raw / deg                                        # row-normalize

    weight = _kaiming_normal(kw, (INPUT_DIM, OUTPUT_DIM))

    # 128-wide tiles: exactly covers the toy graph (and is the v5e-friendly size).
    out, adj_out = graph_convolution(x, adj, weight, tm=128, tk=128)
    out = jax.block_until_ready(out)

    # Correctness check against the plain-JAX reference of the torch forward.
    ref = jnp.maximum(adj @ (x @ weight), 0.0)
    assert out.shape == (N, OUTPUT_DIM)
    assert jnp.allclose(out, ref, atol=1e-4, rtol=1e-4)
    assert jnp.array_equal(adj_out, adj)

    print("KERNEL_OK")
</pallas_src>

<mosaic_0001>
module attributes {stable_mosaic.version = 11 : i64} {
  func.func @_xw_kernel(%arg0: i32, %arg1: memref<128x64xf32, #tpu.memory_space<vmem>>, %arg2: memref<64x128xf32, #tpu.memory_space<vmem>>, %arg3: memref<128x128xf32, #tpu.memory_space<vmem>>) attributes {dimension_semantics = [#tpu.dimension_semantics<parallel>], iteration_bounds = array<i64: 1>, scalar_prefetch = 0 : i64, scratch_operands = 0 : i64, tpu.core_type = #tpu.core_type<tc>, window_params = [{transform_indices = @transform_0, window_bounds = array<i64: 128, 64>}, {pipeline_mode = #tpu.pipeline_mode<synchronous>, transform_indices = @transform_1, window_bounds = array<i64: 64, 128>}, {transform_indices = @transform_2, window_bounds = array<i64: 128, 128>}]} {
    %c0 = arith.constant 0 : index
    %c0_0 = arith.constant 0 : index
    %0 = vector.load %arg1[%c0, %c0_0] : memref<128x64xf32, #tpu.memory_space<vmem>>, vector<128x64xf32>
    %c0_1 = arith.constant 0 : index
    %c0_2 = arith.constant 0 : index
    %1 = vector.load %arg2[%c0_1, %c0_2] : memref<64x128xf32, #tpu.memory_space<vmem>>, vector<64x128xf32>
    %cst = arith.constant dense<0.000000e+00> : vector<128x128xf32>
    %2 = tpu.matmul %0, %1, %cst {dimension_numbers = #tpu.dot_dimension_numbers<[1], [0], [0], [1], [0, 0, 1, 1], [], []>} : vector<128x64xf32>, vector<64x128xf32>, vector<128x128xf32> -> vector<128x128xf32>
    %c0_3 = arith.constant 0 : index
    %c0_4 = arith.constant 0 : index
    %3 = vector.load %arg3[%c0_3, %c0_4] : memref<128x128xf32, #tpu.memory_space<vmem>>, vector<128x128xf32>
    tpu.vector_store %arg3[%c0_3, %c0_4], %2 {strides = array<i32>} : memref<128x128xf32, #tpu.memory_space<vmem>>, vector<128x128xf32>,
    return
  }
  func.func @transform_0(%arg0: i32) -> (i32, i32) {
    %c0_i32 = arith.constant 0 : i32
    %c0_i32_0 = arith.constant 0 : i32
    return %arg0, %c0_i32 : i32, i32
  }
  func.func @transform_1(%arg0: i32) -> (i32, i32) {
    %c0_i32 = arith.constant 0 : i32
    %c0_i32_0 = arith.constant 0 : i32
    %c0_i32_1 = arith.constant 0 : i32
    return %c0_i32, %c0_i32_0 : i32, i32
  }
  func.func @transform_2(%arg0: i32) -> (i32, i32) {
    %c0_i32 = arith.constant 0 : i32
    %c0_i32_0 = arith.constant 0 : i32
    return %arg0, %c0_i32 : i32, i32
  }
}

module attributes {stable_mosaic.version = 11 : i64} {
  func.func @_spmm_relu_kernel(%arg0: i32, %arg1: i32, %arg2: memref<1xi32, #tpu.memory_space<smem>>, %arg3: memref<1x1xi32, #tpu.memory_space<smem>>, %arg4: memref<128x128xf32, #tpu.memory_space<vmem>>, %arg5: memref<128x128xf32, #tpu.memory_space<vmem>>, %arg6: memref<128x128xf32, #tpu.memory_space<vmem>>, %arg7: memref<128x128xf32, #tpu.memory_space<vmem>>) attributes {dimension_semantics = [#tpu.dimension_semantics<parallel>, #tpu.dimension_semantics<arbitrary>], iteration_bounds = array<i64: 1, 1>, scalar_prefetch = 2 : i64, scratch_operands = 1 : i64, tpu.core_type = #tpu.core_type<tc>, window_params = [{transform_indices = @transform_0, window_bounds = array<i64: 128, 128>}, {transform_indices = @transform_1, window_bounds = array<i64: 128, 128>}, {transform_indices = @transform_2, window_bounds = array<i64: 128, 128>}]} {
    %c0_i32 = arith.constant 0 : i32
    %0 = arith.cmpi eq, %arg1, %c0_i32 : i32
    %1 = arith.extui %0 : i1 to i32
    %c0_i32_0 = arith.constant 0 : i32
    %2 = arith.cmpi ne, %1, %c0_i32_0 : i32
    scf.if %2 {
      %cst = arith.constant 0.000000e+00 : f32
      %11 = vector.broadcast %cst : f32 to vector<128x128xf32>
      %c0 = arith.constant 0 : index
      %c0_4 = arith.constant 0 : index
      %12 = vector.load %arg7[%c0, %c0_4] : memref<128x128xf32, #tpu.memory_space<vmem>>, vector<128x128xf32>
      tpu.vector_store %arg7[%c0, %c0_4], %11 {strides = array<i32>} : memref<128x128xf32, #tpu.memory_space<vmem>>, vector<128x128xf32>,
    } else {
    }
    %3 = arith.index_cast %arg0 : i32 to index
    %4 = memref.load %arg2[%3] : memref<1xi32, #tpu.memory_space<smem>>
    %5 = arith.cmpi slt, %arg1, %4 : i32
    %6 = arith.extui %5 : i1 to i32
    %c0_i32_1 = arith.constant 0 : i32
    %7 = arith.cmpi ne, %6, %c0_i32_1 : i32
    scf.if %7 {
      %c0 = arith.constant 0 : index
      %c0_4 = arith.constant 0 : index
      %11 = vector.load %arg7[%c0, %c0_4] : memref<128x128xf32, #tpu.memory_space<vmem>>, vector<128x128xf32>
      %c0_5 = arith.constant 0 : index
      %c0_6 = arith.constant 0 : index
      %12 = vector.load %arg4[%c0_5, %c0_6] : memref<128x128xf32, #tpu.memory_space<vmem>>, vector<128x128xf32>
      %c0_7 = arith.constant 0 : index
      %c0_8 = arith.constant 0 : index
      %13 = vector.load %arg5[%c0_7, %c0_8] : memref<128x128xf32, #tpu.memory_space<vmem>>, vector<128x128xf32>
      %cst = arith.constant dense<0.000000e+00> : vector<128x128xf32>
      %14 = tpu.matmul %12, %13, %cst {dimension_numbers = #tpu.dot_dimension_numbers<[1], [0], [0], [1], [0, 0, 1, 1], [], []>} : vector<128x128xf32>, vector<128x128xf32>, vector<128x128xf32> -> vector<128x128xf32>
      %15 = arith.addf %11, %14 : vector<128x128xf32>
      %c0_9 = arith.constant 0 : index
      %c0_10 = arith.constant 0 : index
      %16 = vector.load %arg7[%c0_9, %c0_10] : memref<128x128xf32, #tpu.memory_space<vmem>>, vector<128x128xf32>
      tpu.vector_store %arg7[%c0_9, %c0_10], %15 {strides = array<i32>} : memref<128x128xf32, #tpu.memory_space<vmem>>, vector<128x128xf32>,
    } else {
    }
    %c0_i32_2 = arith.constant 0 : i32
    %8 = arith.cmpi eq, %arg1, %c0_i32_2 : i32
    %9 = arith.extui %8 : i1 to i32
    %c0_i32_3 = arith.constant 0 : i32
    %10 = arith.cmpi ne, %9, %c0_i32_3 : i32
    scf.if %10 {
      %c0 = arith.constant 0 : index
      %c0_4 = arith.constant 0 : index
      %11 = vector.load %arg7[%c0, %c0_4] : memref<128x128xf32, #tpu.memory_space<vmem>>, vector<128x128xf32>
      %cst = arith.constant 0.000000e+00 : f32
      %12 = vector.broadcast %cst : f32 to vector<128x128xf32>
      %13 = arith.maximumf %11, %12 : vector<128x128xf32>
      %c0_5 = arith.constant 0 : index
      %c0_6 = arith.constant 0 : index
      %14 = vector.load %arg6[%c0_5, %c0_6] : memref<128x128xf32, #tpu.memory_space<vmem>>, vector<128x128xf32>
      tpu.vector_store %arg6[%c0_5, %c0_6], %13 {strides = array<i32>} : memref<128x128xf32, #tpu.memory_space<vmem>>, vector<128x128xf32>,
    } else {
    }
    return
  }
  func.func @transform_0(%arg0: i32, %arg1: i32, %arg2: memref<1xi32, #tpu.memory_space<smem>>, %arg3: memref<1x1xi32, #tpu.memory_space<smem>>) -> (i32, i32) {
    %0 = arith.index_cast %arg0 : i32 to index
    %1 = arith.index_cast %arg1 : i32 to index
    %2 = memref.load %arg3[%0, %1] : memref<1x1xi32, #tpu.memory_space<smem>>
    %c0_i32 = arith.constant 0 : i32
    return %arg0, %2 : i32, i32
  }
  func.func @transform_1(%arg0: i32, %arg1: i32, %arg2: memref<1xi32, #tpu.memory_space<smem>>, %arg3: memref<1x1xi32, #tpu.memory_space<smem>>) -> (i32, i32) {
    %0 = arith.index_cast %arg0 : i32 to index
    %1 = arith.index_cast %arg1 : i32 to index
    %2 = memref.load %arg3[%0, %1] : memref<1x1xi32, #tpu.memory_space<smem>>
    %c0_i32 = arith.constant 0 : i32
    %c0_i32_0 = arith.constant 0 : i32
    return %2, %c0_i32 : i32, i32
  }
  func.func @transform_2(%arg0: i32, %arg1: i32, %arg2: memref<1xi32, #tpu.memory_space<smem>>, %arg3: memref<1x1xi32, #tpu.memory_space<smem>>) -> (i32, i32) {
    %c0_i32 = arith.constant 0 : i32
    %c0_i32_0 = arith.constant 0 : i32
    return %arg0, %c0_i32 : i32, i32
  }
}

</mosaic_0001>

<llo_original>
// kernel: _gcn_forward_padded.2
$region0: #{_gcn_forward_padded.2}
  #allocation0 [shape = 'u32[]', space=smem, size = 0x4, offset = 0x4, fixed_abs, tag = 'smem constant byte address 0x4 - core index']
  #allocation1 [shape = 'u32[144,128]{1,0:T(1,128)}', space=vmem, size = 0x12000, scoped, tag = 'internal scratch']
  %s0 = inlined_call_operand.vmem [shape: f32[128,64], index: 0, kind: input, shape index: {}]
  %s1 = inlined_call_operand.vmem [shape: f32[64,128], index: 1, kind: input, shape index: {}]
  %s2 = inlined_call_operand.vmem [shape: f32[128,128], index: 2, kind: output, shape index: {}]
  %s3 = sld [smem:[#allocation0]]
  $region18: #{_gcn_forward_padded.2} parent=0
    _
  %s5 = ssub.s32 1, %s3
  %s6 = scalar_select 0, %s5, %s3
  // Predicated region
  $region2: #{_gcn_forward_padded.2} parent=0 // pred_check
    _
  $region3: #{_gcn_forward_padded.2} parent=0 // pred_check_branch
    %8 = sbr.rel (0) target = $region5
  $region4: #{_gcn_forward_padded.2} parent=0 // pred_region
    _
  $region5: #{_gcn_forward_padded.2} parent=0 // pred_fallthru
    _
  // Predicated region
  $region6: #{_gcn_forward_padded.2} parent=0 // pred_check
    _
  $region7: #{_gcn_forward_padded.2} parent=0 // pred_check_branch
    %10 = sbr.rel (0) target = $region9
  $region8: #{_gcn_forward_padded.2} parent=0 // pred_region
    _
  $region9: #{_gcn_forward_padded.2} parent=0 // pred_fallthru
    _
  %v11 = vld [vmem:[%s0] sm:$0xff]
  %v12 = vld [vmem:[%s0 + $0x8] sm:$0xff]
  %v13 = vld [vmem:[%s0 + $0x10] sm:$0xff]
  %v14 = vld [vmem:[%s0 + $0x18] sm:$0xff]
  %v15 = vld [vmem:[%s0 + $0x20] sm:$0xff]
  %v16 = vld [vmem:[%s0 + $0x28] sm:$0xff]
  %v17 = vld [vmem:[%s0 + $0x30] sm:$0xff]
  %v18 = vld [vmem:[%s0 + $0x38] sm:$0xff]
  %v19 = vld [vmem:[%s0 + $0x40] sm:$0xff]
  %v20 = vld [vmem:[%s0 + $0x48] sm:$0xff]
  %v21 = vld [vmem:[%s0 + $0x50] sm:$0xff]
  %v22 = vld [vmem:[%s0 + $0x58] sm:$0xff]
  %v23 = vld [vmem:[%s0 + $0x60] sm:$0xff]
  %v24 = vld [vmem:[%s0 + $0x68] sm:$0xff]
  %v25 = vld [vmem:[%s0 + $0x70] sm:$0xff]
  %v26 = vld [vmem:[%s0 + $0x78] sm:$0xff]
  %v27 = vld [vmem:[%s1] sm:$0xff]
  %v28 = vld [vmem:[%s1 + $0x8] sm:$0xff]
  %v29 = vld [vmem:[%s1 + $0x10] sm:$0xff]
  %v30 = vld [vmem:[%s1 + $0x18] sm:$0xff]
  %v31 = vld [vmem:[%s1 + $0x20] sm:$0xff]
  %v32 = vld [vmem:[%s1 + $0x28] sm:$0xff]
  %v33 = vld [vmem:[%s1 + $0x30] sm:$0xff]
  %v34 = vld [vmem:[%s1 + $0x38] sm:$0xff]
  %vm35 = vcmask 523264
  %v37 = vsel %vm35, %v11, 0
  %v40 = vsel %vm35, %v12, 0
  %v43 = vsel %vm35, %v13, 0
  %v46 = vsel %vm35, %v14, 0
  %v49 = vsel %vm35, %v15, 0
  %v52 = vsel %vm35, %v16, 0
  %v55 = vsel %vm35, %v17, 0
  %v58 = vsel %vm35, %v18, 0
  %v61 = vsel %vm35, %v19, 0
  %v64 = vsel %vm35, %v20, 0
  %v67 = vsel %vm35, %v21, 0
  %v70 = vsel %vm35, %v22, 0
  %v73 = vsel %vm35, %v23, 0
  %v76 = vsel %vm35, %v24, 0
  %v79 = vsel %vm35, %v25, 0
  %v82 = vsel %vm35, %v26, 0
  %84 = vmatprep.subr.mxu0 0.0
  %85 = vmatpush1.msra.mxu0 0.0
  %86 = vmatprep.subr.mxu0 0.0
  %87 = vmatpush1.msra.mxu0 0.0
  %88 = vmatprep.subr.mxu0 0.0
  %89 = vmatpush1.msra.mxu0 0.0
  %90 = vmatprep.subr.mxu0 0.0
  %91 = vmatpush1.msra.mxu0 0.0
  %92 = vmatprep.subr.mxu0 0.0
  %93 = vmatpush1.msra.mxu0 0.0
  %94 = vmatprep.subr.mxu0 0.0
  %95 = vmatpush1.msra.mxu0 0.0
  %96 = vmatprep.subr.mxu0 0.0
  %97 = vmatpush1.msra.mxu0 0.0
  %98 = vmatprep.subr.mxu0 0.0
  %99 = vmatpush1.msra.mxu0 0.0
  %100 = vmatprep.subr.mxu0 0.0
  %101 = vmatpush1.msra.mxu0 %v34
  %102 = vmatprep.subr.mxu0 0.0
  %103 = vmatpush1.msra.mxu0 %v33
  %104 = vmatprep.subr.mxu0 0.0
  %105 = vmatpush1.msra.mxu0 %v32
  %106 = vmatprep.subr.mxu0 0.0
  %107 = vmatpush1.msra.mxu0 %v31
  %108 = vmatprep.subr.mxu0 0.0
  %109 = vmatpush1.msra.mxu0 %v30
  %110 = vmatprep.subr.mxu0 0.0
  %111 = vmatpush1.msra.mxu0 %v29
  %112 = vmatprep.subr.mxu0 0.0
  %113 = vmatpush1.msra.mxu0 %v28
  %114 = vmatprep.subr.mxu0 0.0
  %115 = vmatpush1.msra.mxu0 %v27
  %116 = vmatprep.subr.mxu0 0.0
  %117 = vmatpush2.msra.mxu0 0.0
  %118 = vmatprep.subr.mxu0 0.0
  %119 = vmatpush2.msra.mxu0 0.0
  %120 = vmatprep.subr.mxu0 0.0
  %121 = vmatpush2.msra.mxu0 0.0
  %122 = vmatprep.subr.mxu0 0.0
  %123 = vmatpush2.msra.mxu0 0.0
  %124 = vmatprep.subr.mxu0 0.0
  %125 = vmatpush2.msra.mxu0 0.0
  %126 = vmatprep.subr.mxu0 0.0
  %127 = vmatpush2.msra.mxu0 0.0
  %128 = vmatprep.subr.mxu0 0.0
  %129 = vmatpush2.msra.mxu0 0.0
  %130 = vmatprep.subr.mxu0 0.0
  %131 = vmatpush2.msra.mxu0 0.0
  %132 = vmatprep.subr.mxu0 0.0
  %133 = vmatpush2.msra.mxu0 0.0
  %134 = vmatprep.subr.mxu0 0.0
  %135 = vmatpush2.msra.mxu0 0.0
  %136 = vmatprep.subr.mxu0 0.0
  %137 = vmatpush2.msra.mxu0 0.0
  %138 = vmatprep.subr.mxu0 0.0
  %139 = vmatpush2.msra.mxu0 0.0
  %140 = vmatprep.subr.mxu0 0.0
  %141 = vmatpush2.msra.mxu0 0.0
  %142 = vmatprep.subr.mxu0 0.0
  %143 = vmatpush2.msra.mxu0 0.0
  %144 = vmatprep.subr.mxu0 0.0
  %145 = vmatpush2.msra.mxu0 0.0
  %146 = vmatprep.subr.mxu0 0.0
  %147 = vmatpush2.msra.mxu0 0.0
  %148 = vmatprep.mubr.f32.mxu0 0.0
  %149 = vmatmul.mubr.f32.gmra.mxu0 %v37
  %v150 = vpop.f32.mrf.mxu0
  %v151 = vadd.f32 0.0, %v150
  %v152 = vpop.f32.mrf.mxu0
  %153 = vmatprep.mubr.f32.mxu0 0.0
  %154 = vmatmul.mubr.f32.gmra.mxu0 %v40
  %v155 = vpop.f32.mrf.mxu0
  %v156 = vadd.f32 0.0, %v155
  %v157 = vpop.f32.mrf.mxu0
  %158 = vmatprep.mubr.f32.mxu0 0.0
  %159 = vmatmul.mubr.f32.gmra.mxu0 %v43
  %v160 = vpop.f32.mrf.mxu0
  %v161 = vadd.f32 0.0, %v160
  %v162 = vpop.f32.mrf.mxu0
  %163 = vmatprep.mubr.f32.mxu0 0.0
  %164 = vmatmul.mubr.f32.gmra.mxu0 %v46
  %v165 = vpop.f32.mrf.mxu0
  %v166 = vadd.f32 0.0, %v165
  %v167 = vpop.f32.mrf.mxu0
  %168 = vmatprep.mubr.f32.mxu0 0.0
  %169 = vmatmul.mubr.f32.gmra.mxu0 %v49
  %v170 = vpop.f32.mrf.mxu0
  %v171 = vadd.f32 0.0, %v170
  %v172 = vpop.f32.mrf.mxu0
  %173 = vmatprep.mubr.f32.mxu0 0.0
  %174 = vmatmul.mubr.f32.gmra.mxu0 %v52
  %v175 = vpop.f32.mrf.mxu0
  %v176 = vadd.f32 0.0, %v175
  %v177 = vpop.f32.mrf.mxu0
  %178 = vmatprep.mubr.f32.mxu0 0.0
  %179 = vmatmul.mubr.f32.gmra.mxu0 %v55
  %v180 = vpop.f32.mrf.mxu0
  %v181 = vadd.f32 0.0, %v180
  %v182 = vpop.f32.mrf.mxu0
  %183 = vmatprep.mubr.f32.mxu0 0.0
  %184 = vmatmul.mubr.f32.gmra.mxu0 %v58
  %v185 = vpop.f32.mrf.mxu0
  %v186 = vadd.f32 0.0, %v185
  %v187 = vpop.f32.mrf.mxu0
  %188 = vmatprep.mubr.f32.mxu0 0.0
  %189 = vmatmul.mubr.f32.gmra.mxu0 %v61
  %v190 = vpop.f32.mrf.mxu0
  %v191 = vadd.f32 0.0, %v190
  %v192 = vpop.f32.mrf.mxu0
  %193 = vmatprep.mubr.f32.mxu0 0.0
  %194 = vmatmul.mubr.f32.gmra.mxu0 %v64
  %v195 = vpop.f32.mrf.mxu0
  %v196 = vadd.f32 0.0, %v195
  %v197 = vpop.f32.mrf.mxu0
  %198 = vmatprep.mubr.f32.mxu0 0.0
  %199 = vmatmul.mubr.f32.gmra.mxu0 %v67
  %v200 = vpop.f32.mrf.mxu0
  %v201 = vadd.f32 0.0, %v200
  %v202 = vpop.f32.mrf.mxu0
  %203 = vmatprep.mubr.f32.mxu0 0.0
  %204 = vmatmul.mubr.f32.gmra.mxu0 %v70
  %v205 = vpop.f32.mrf.mxu0
  %v206 = vadd.f32 0.0, %v205
  %v207 = vpop.f32.mrf.mxu0
  %208 = vmatprep.mubr.f32.mxu0 0.0
  %209 = vmatmul.mubr.f32.gmra.mxu0 %v73
  %v210 = vpop.f32.mrf.mxu0
  %v211 = vadd.f32 0.0, %v210
  %v212 = vpop.f32.mrf.mxu0
  %213 = vmatprep.mubr.f32.mxu0 0.0
  %214 = vmatmul.mubr.f32.gmra.mxu0 %v76
  %v215 = vpop.f32.mrf.mxu0
  %v216 = vadd.f32 0.0, %v215
  %v217 = vpop.f32.mrf.mxu0
  %218 = vmatprep.mubr.f32.mxu0 0.0
  %219 = vmatmul.mubr.f32.gmra.mxu0 %v79
  %v220 = vpop.f32.mrf.mxu0
  %v221 = vadd.f32 0.0, %v220
  %v222 = vpop.f32.mrf.mxu0
  %223 = vmatprep.mubr.f32.mxu0 0.0
  %224 = vmatmul.mubr.f32.gmra.mxu0 %v82
  %v225 = vpop.f32.mrf.mxu0
  %v226 = vadd.f32 0.0, %v225
  %v227 = vpop.f32.mrf.mxu0
  %228 = vdwg.mxu0
  %229 = vst [vmem:[%s2] sm:$0xff] %v151
  %230 = vst [vmem:[%s2 + $0x8] sm:$0xff] %v156
  %231 = vst [vmem:[%s2 + $0x10] sm:$0xff] %v161
  %232 = vst [vmem:[%s2 + $0x18] sm:$0xff] %v166
  %233 = vst [vmem:[%s2 + $0x20] sm:$0xff] %v171
  %234 = vst [vmem:[%s2 + $0x28] sm:$0xff] %v176
  %235 = vst [vmem:[%s2 + $0x30] sm:$0xff] %v181
  %236 = vst [vmem:[%s2 + $0x38] sm:$0xff] %v186
  %237 = vst [vmem:[%s2 + $0x40] sm:$0xff] %v191
  %238 = vst [vmem:[%s2 + $0x48] sm:$0xff] %v196
  %239 = vst [vmem:[%s2 + $0x50] sm:$0xff] %v201
  %240 = vst [vmem:[%s2 + $0x58] sm:$0xff] %v206
  %241 = vst [vmem:[%s2 + $0x60] sm:$0xff] %v211
  %242 = vst [vmem:[%s2 + $0x68] sm:$0xff] %v216
  %243 = vst [vmem:[%s2 + $0x70] sm:$0xff] %v221
  %244 = vst [vmem:[%s2 + $0x78] sm:$0xff] %v226
  // Predicated region
  $region10: #{_gcn_forward_padded.2} parent=0 // pred_check
    _
  $region11: #{_gcn_forward_padded.2} parent=0 // pred_check_branch
    %246 = sbr.rel (0) target = $region13
  $region12: #{_gcn_forward_padded.2} parent=0 // pred_region
    _
  $region13: #{_gcn_forward_padded.2} parent=0 // pred_fallthru
    _
  // Predicated region
  $region14: #{_gcn_forward_padded.2} parent=0 // pred_check
    _
  $region15: #{_gcn_forward_padded.2} parent=0 // pred_check_branch
    %248 = sbr.rel (0) target = $region17
  $region16: #{_gcn_forward_padded.2} parent=0 // pred_region
    _
  $region17: #{_gcn_forward_padded.2} parent=0 // pred_fallthru
    _

// kernel: _gcn_forward_padded.3
$region0: #{_gcn_forward_padded.3}
  #allocation0 [shape = 'u32[]', space=smem, size = 0x4, offset = 0x4, fixed_abs, tag = 'smem constant byte address 0x4 - core index']
  #allocation1 [shape = 'u32[144,128]{1,0:T(1,128)}', space=vmem, size = 0x12000, scoped, tag = 'internal scratch']
  #allocation2 [shape = 'f32[128,128]{1,0:T(8,128)}', space=vmem, size = 0x10000, scoped, tag = 'scratch operand']
  #allocation3 [shape = 's32[1]{0}', space=sflag, size = 0x4, scoped, tag = 'scoped memory for _gcn_forward_padded.3']
  #allocation4 [shape = 's32[1]{0:T(128)S(6)}', space=smem, size = 0x200, scoped, tag = 'prefetched SMEM operand 0']
  #allocation5 [shape = 's32[1,1]{1,0:T(1,128)S(6)}', space=smem, size = 0x200, scoped, tag = 'prefetched SMEM operand 1']
  %s0 = inlined_call_operand.<no memory space> [shape: s32[1], index: 0, kind: input, shape index: {}]
  %s1 = inlined_call_operand.<no memory space> [shape: s32[1,1], index: 1, kind: input, shape index: {}]
  %s2 = inlined_call_operand.vmem [shape: f32[128,128], index: 2, kind: input, shape index: {}]
  %s3 = inlined_call_operand.vmem [shape: f32[128,128], index: 3, kind: input, shape index: {}]
  %s4 = inlined_call_operand.hbm [shape: f32[128,128], index: 4, kind: output, shape index: {}]
  %s5 = sld [smem:[#allocation0]]
  $region30: #{_gcn_forward_padded.3} parent=0
    _
  %s7 = ssub.s32 1, %s5
  %s8 = scalar_select 0, %s7, %s5
  %9 = sst [smem:[#allocation4]] %s0
  %10 = sst [smem:[#allocation5]] %s1
  $region1: #{_gcn_forward_padded.3} parent=0
    #allocation6 [shape = 'u8[65536]{0}', space=vmem, size = 0x10000, scoped, tag = 'output window, operand 0, single buffered']
    #allocation7 [shape = 's32[1]{0}', space=sflag, size = 0x4, scoped, tag = 'scoped memory for _gcn_forward_padded.3']
    %11 = vsyncpa [#allocation7], 0
    // Predicated region
    $region2: #{_gcn_forward_padded.3} parent=1 // pred_check
      _
    $region3: #{_gcn_forward_padded.3} parent=1 // pred_check_branch
      %13 = sbr.rel (0) target = $region5
    $region4: #{_gcn_forward_padded.3} parent=1 // pred_region
      %s14 = sadd.s32 0, 0
      %s15 = smul.u32 %s14, 128
      %s16 = sadd.s32 %s15, 0
      %s17 = sld [smem:[#allocation5 + %s16]]
      %p18 = scmp.lt.s32.totalorder %s17, 0
      %s19 = scalar_select %p18, %s17, 0
      %s20 = smul.addr %s19, 8
      %s21 = scalar_lea.vmem %s2, %s20
      %s22 = sadd.s32 0, 0
      %s23 = smul.u32 %s22, 128
      %s24 = sadd.s32 %s23, 0
      %s25 = sld [smem:[#allocation5 + %s24]]
    $region5: #{_gcn_forward_padded.3} parent=1 // pred_fallthru
      _
    // Predicated region
    $region6: #{_gcn_forward_padded.3} parent=1 // pred_check
      _
    $region7: #{_gcn_forward_padded.3} parent=1 // pred_check_branch
      %27 = sbr.rel (0) target = $region9
    $region8: #{_gcn_forward_padded.3} parent=1 // pred_region
      %s28 = sadd.s32 0, 0
      %s29 = smul.u32 %s28, 128
      %s30 = sadd.s32 %s29, 0
      %s31 = sld [smem:[#allocation5 + %s30]]
      %s32 = smul.u32 16, %s31
      %p33 = scmp.lt.s32.totalorder %s32, 15
      %s34 = scalar_select %p33, %s32, 15
      %s35 = smul.addr %s34, 8
      %s36 = scalar_lea.vmem %s3, %s35
      %s37 = sadd.s32 0, 0
      %s38 = smul.u32 %s37, 128
      %s39 = sadd.s32 %s38, 0
      %s40 = sld [smem:[#allocation5 + %s39]]
      %s41 = smul.u32 16, %s40
    $region9: #{_gcn_forward_padded.3} parent=1 // pred_fallthru
      _
    %s42 = sadd.s32 0, 0
    %s43 = smul.u32 %s42, 128
    %s44 = sadd.s32 %s43, 0
    %s45 = sld [smem:[#allocation5 + %s44]]
    %p46 = scmp.lt.s32.totalorder %s45, 0
    %s47 = scalar_select %p46, %s45, 0
    %s48 = smul.addr %s47, 8
    %s49 = scalar_lea.vmem %s2, %s48
    %s50 = sadd.s32 0, 0
    %s51 = smul.u32 %s50, 128
    %s52 = sadd.s32 %s51, 0
    %s53 = sld [smem:[#allocation5 + %s52]]
    %s54 = smul.u32 16, %s53
    %p55 = scmp.lt.s32.totalorder %s54, 15
    %s56 = scalar_select %p55, %s54, 15
    %s57 = smul.addr %s56, 8
    %s58 = scalar_lea.vmem %s3, %s57
    %s59 = sadd.s32 0, 0
    %s60 = smul.u32 %s59, 128
    %s61 = sadd.s32 %s60, 0
    %s62 = sld [smem:[#allocation5 + %s61]]
    %p63 = scmp.lt.s32.totalorder %s62, 0
    %s64 = scalar_select %p63, %s62, 0
    %s65 = smul.addr %s64, 8
    %s66 = scalar_lea.vmem %s2, %s65
    %s67 = sadd.s32 0, 0
    %s68 = smul.u32 %s67, 128
    %s69 = sadd.s32 %s68, 0
    %s70 = sld [smem:[#allocation5 + %s69]]
    %s71 = sadd.s32 0, 0
    %s72 = smul.u32 %s71, 128
    %s73 = sadd.s32 %s72, 0
    %s74 = sld [smem:[#allocation5 + %s73]]
    %s75 = smul.u32 16, %s74
    %p76 = scmp.lt.s32.totalorder %s75, 15
    %s77 = scalar_select %p76, %s75, 15
    %s78 = smul.addr %s77, 8
    %s79 = scalar_lea.vmem %s3, %s78
    %s80 = sadd.s32 0, 0
    %s81 = smul.u32 %s80, 128
    %s82 = sadd.s32 %s81, 0
    %s83 = sld [smem:[#allocation5 + %s82]]
    %s84 = smul.u32 16, %s83
    %p85 = scmp.eq.s32.totalorder 0, 0
    // Predicated region
    $region10: #{_gcn_forward_padded.3} parent=1 // pred_check
      %p86 = pneg %p85
    $region11: #{_gcn_forward_padded.3} parent=1 // pred_check_branch
      %88 = sbr.rel (%p86) target = $region13
    $region12: #{_gcn_forward_padded.3} parent=1 // pred_region
      %89 = vst [vmem:[#allocation2] sm:$0xff] 0.0
      %90 = vst [vmem:[#allocation2 + $0x8] sm:$0xff] 0.0
      %91 = vst [vmem:[#allocation2 + $0x10] sm:$0xff] 0.0
      %92 = vst [vmem:[#allocation2 + $0x18] sm:$0xff] 0.0
      %93 = vst [vmem:[#allocation2 + $0x20] sm:$0xff] 0.0
      %94 = vst [vmem:[#allocation2 + $0x28] sm:$0xff] 0.0
      %95 = vst [vmem:[#allocation2 + $0x30] sm:$0xff] 0.0
      %96 = vst [vmem:[#allocation2 + $0x38] sm:$0xff] 0.0
      %97 = vst [vmem:[#allocation2 + $0x40] sm:$0xff] 0.0
      %98 = vst [vmem:[#allocation2 + $0x48] sm:$0xff] 0.0
      %99 = vst [vmem:[#allocation2 + $0x50] sm:$0xff] 0.0
      %100 = vst [vmem:[#allocation2 + $0x58] sm:$0xff] 0.0
      %101 = vst [vmem:[#allocation2 + $0x60] sm:$0xff] 0.0
      %102 = vst [vmem:[#allocation2 + $0x68] sm:$0xff] 0.0
      %103 = vst [vmem:[#allocation2 + $0x70] sm:$0xff] 0.0
      %104 = vst [vmem:[#allocation2 + $0x78] sm:$0xff] 0.0
    $region13: #{_gcn_forward_padded.3} parent=1 // pred_fallthru
      _
    %s105 = sld [smem:[#allocation4]]
    %p106 = scmp.lt.s32.totalorder 0, %s105
    // Predicated region
    $region14: #{_gcn_forward_padded.3} parent=1 // pred_check
      %p107 = pneg %p106
    $region15: #{_gcn_forward_padded.3} parent=1 // pred_check_branch
      %109 = sbr.rel (%p107) target = $region17
    $region16: #{_gcn_forward_padded.3} parent=1 // pred_region
      %v110 = vld [vmem:[#allocation2] sm:$0xff]
      %v111 = vld [vmem:[#allocation2 + $0x8] sm:$0xff]
      %v112 = vld [vmem:[#allocation2 + $0x10] sm:$0xff]
      %v113 = vld [vmem:[#allocation2 + $0x18] sm:$0xff]
      %v114 = vld [vmem:[#allocation2 + $0x20] sm:$0xff]
      %v115 = vld [vmem:[#allocation2 + $0x28] sm:$0xff]
      %v116 = vld [vmem:[#allocation2 + $0x30] sm:$0xff]
      %v117 = vld [vmem:[#allocation2 + $0x38] sm:$0xff]
      %v118 = vld [vmem:[#allocation2 + $0x40] sm:$0xff]
      %v119 = vld [vmem:[#allocation2 + $0x48] sm:$0xff]
      %v120 = vld [vmem:[#allocation2 + $0x50] sm:$0xff]
      %v121 = vld [vmem:[#allocation2 + $0x58] sm:$0xff]
      %v122 = vld [vmem:[#allocation2 + $0x60] sm:$0xff]
      %v123 = vld [vmem:[#allocation2 + $0x68] sm:$0xff]
      %v124 = vld [vmem:[#allocation2 + $0x70] sm:$0xff]
      %v125 = vld [vmem:[#allocation2 + $0x78] sm:$0xff]
      %v126 = vld [vmem:[%s66] sm:$0xff]
      %v127 = vld [vmem:[%s66 + $0x8] sm:$0xff]
      %v128 = vld [vmem:[%s66 + $0x10] sm:$0xff]
      %v129 = vld [vmem:[%s66 + $0x18] sm:$0xff]
      %v130 = vld [vmem:[%s66 + $0x20] sm:$0xff]
      %v131 = vld [vmem:[%s66 + $0x28] sm:$0xff]
      %v132 = vld [vmem:[%s66 + $0x30] sm:$0xff]
      %v133 = vld [vmem:[%s66 + $0x38] sm:$0xff]
      %v134 = vld [vmem:[%s66 + $0x40] sm:$0xff]
      %v135 = vld [vmem:[%s66 + $0x48] sm:$0xff]
      %v136 = vld [vmem:[%s66 + $0x50] sm:$0xff]
      %v137 = vld [vmem:[%s66 + $0x58] sm:$0xff]
      %v138 = vld [vmem:[%s66 + $0x60] sm:$0xff]
      %v139 = vld [vmem:[%s66 + $0x68] sm:$0xff]
      %v140 = vld [vmem:[%s66 + $0x70] sm:$0xff]
      %v141 = vld [vmem:[%s66 + $0x78] sm:$0xff]
      %v142 = vld [vmem:[%s79] sm:$0xff]
      %v143 = vld [vmem:[%s79 + $0x8] sm:$0xff]
      %v144 = vld [vmem:[%s79 + $0x10] sm:$0xff]
      %v145 = vld [vmem:[%s79 + $0x18] sm:$0xff]
      %v146 = vld [vmem:[%s79 + $0x20] sm:$0xff]
      %v147 = vld [vmem:[%s79 + $0x28] sm:$0xff]
      %v148 = vld [vmem:[%s79 + $0x30] sm:$0xff]
      %v149 = vld [vmem:[%s79 + $0x38] sm:$0xff]
      %v150 = vld [vmem:[%s79 + $0x40] sm:$0xff]
      %v151 = vld [vmem:[%s79 + $0x48] sm:$0xff]
      %v152 = vld [vmem:[%s79 + $0x50] sm:$0xff]
      %v153 = vld [vmem:[%s79 + $0x58] sm:$0xff]
      %v154 = vld [vmem:[%s79 + $0x60] sm:$0xff]
      %v155 = vld [vmem:[%s79 + $0x68] sm:$0xff]
      %v156 = vld [vmem:[%s79 + $0x70] sm:$0xff]
      %v157 = vld [vmem:[%s79 + $0x78] sm:$0xff]
      %158 = vmatprep.subr.mxu0 0.0
      %159 = vmatpush1.msra.mxu0 %v157
      %160 = vmatprep.subr.mxu0 0.0
      %161 = vmatpush1.msra.mxu0 %v156
      %162 = vmatprep.subr.mxu0 0.0
      %163 = vmatpush1.msra.mxu0 %v155
      %164 = vmatprep.subr.mxu0 0.0
      %165 = vmatpush1.msra.mxu0 %v154
      %166 = vmatprep.subr.mxu0 0.0
      %167 = vmatpush1.msra.mxu0 %v153
      %168 = vmatprep.subr.mxu0 0.0
      %169 = vmatpush1.msra.mxu0 %v152
      %170 = vmatprep.subr.mxu0 0.0
      %171 = vmatpush1.msra.mxu0 %v151
      %172 = vmatprep.subr.mxu0 0.0
      %173 = vmatpush1.msra.mxu0 %v150
      %174 = vmatprep.subr.mxu0 0.0
      %175 = vmatpush1.msra.mxu0 %v149
      %176 = vmatprep.subr.mxu0 0.0
      %177 = vmatpush1.msra.mxu0 %v148
      %178 = vmatprep.subr.mxu0 0.0
      %179 = vmatpush1.msra.mxu0 %v147
      %180 = vmatprep.subr.mxu0 0.0
      %181 = vmatpush1.msra.mxu0 %v146
      %182 = vmatprep.subr.mxu0 0.0
      %183 = vmatpush1.msra.mxu0 %v145
      %184 = vmatprep.subr.mxu0 0.0
      %185 = vmatpush1.msra.mxu0 %v144
      %186 = vmatprep.subr.mxu0 0.0
      %187 = vmatpush1.msra.mxu0 %v143
      %188 = vmatprep.subr.mxu0 0.0
      %189 = vmatpush1.msra.mxu0 %v142
      %190 = vmatprep.subr.mxu0 0.0
      %191 = vmatpush2.msra.mxu0 0.0
      %192 = vmatprep.subr.mxu0 0.0
      %193 = vmatpush2.msra.mxu0 0.0
      %194 = vmatprep.subr.mxu0 0.0
      %195 = vmatpush2.msra.mxu0 0.0
      %196 = vmatprep.subr.mxu0 0.0
      %197 = vmatpush2.msra.mxu0 0.0
      %198 = vmatprep.subr.mxu0 0.0
      %199 = vmatpush2.msra.mxu0 0.0
      %200 = vmatprep.subr.mxu0 0.0
      %201 = vmatpush2.msra.mxu0 0.0
      %202 = vmatprep.subr.mxu0 0.0
      %203 = vmatpush2.msra.mxu0 0.0
      %204 = vmatprep.subr.mxu0 0.0
      %205 = vmatpush2.msra.mxu0 0.0
      %206 = vmatprep.subr.mxu0 0.0
      %207 = vmatpush2.msra.mxu0 0.0
      %208 = vmatprep.subr.mxu0 0.0
      %209 = vmatpush2.msra.mxu0 0.0
      %210 = vmatprep.subr.mxu0 0.0
      %211 = vmatpush2.msra.mxu0 0.0
      %212 = vmatprep.subr.mxu0 0.0
      %213 = vmatpush2.msra.mxu0 0.0
      %214 = vmatprep.subr.mxu0 0.0
      %215 = vmatpush2.msra.mxu0 0.0
      %216 = vmatprep.subr.mxu0 0.0
      %217 = vmatpush2.msra.mxu0 0.0
      %218 = vmatprep.subr.mxu0 0.0
      %219 = vmatpush2.msra.mxu0 0.0
      %220 = vmatprep.subr.mxu0 0.0
      %221 = vmatpush2.msra.mxu0 0.0
      %222 = vmatprep.mubr.f32.mxu0 0.0
      %223 = vmatmul.mubr.f32.gmra.mxu0 %v126
      %v224 = vpop.f32.mrf.mxu0
      %v225 = vadd.f32 0.0, %v224
      %v226 = vpop.f32.mrf.mxu0
      %227 = vmatprep.mubr.f32.mxu0 0.0
      %228 = vmatmul.mubr.f32.gmra.mxu0 %v127
      %v229 = vpop.f32.mrf.mxu0
      %v230 = vadd.f32 0.0, %v229
      %v231 = vpop.f32.mrf.mxu0
      %232 = vmatprep.mubr.f32.mxu0 0.0
      %233 = vmatmul.mubr.f32.gmra.mxu0 %v128
      %v234 = vpop.f32.mrf.mxu0
      %v235 = vadd.f32 0.0, %v234
      %v236 = vpop.f32.mrf.mxu0
      %237 = vmatprep.mubr.f32.mxu0 0.0
      %238 = vmatmul.mubr.f32.gmra.mxu0 %v129
      %v239 = vpop.f32.mrf.mxu0
      %v240 = vadd.f32 0.0, %v239
      %v241 = vpop.f32.mrf.mxu0
      %242 = vmatprep.mubr.f32.mxu0 0.0
      %243 = vmatmul.mubr.f32.gmra.mxu0 %v130
      %v244 = vpop.f32.mrf.mxu0
      %v245 = vadd.f32 0.0, %v244
      %v246 = vpop.f32.mrf.mxu0
      %247 = vmatprep.mubr.f32.mxu0 0.0
      %248 = vmatmul.mubr.f32.gmra.mxu0 %v131
      %v249 = vpop.f32.mrf.mxu0
      %v250 = vadd.f32 0.0, %v249
      %v251 = vpop.f32.mrf.mxu0
      %252 = vmatprep.mubr.f32.mxu0 0.0
      %253 = vmatmul.mubr.f32.gmra.mxu0 %v132
      %v254 = vpop.f32.mrf.mxu0
      %v255 = vadd.f32 0.0, %v254
      %v256 = vpop.f32.mrf.mxu0
      %257 = vmatprep.mubr.f32.mxu0 0.0
      %258 = vmatmul.mubr.f32.gmra.mxu0 %v133
      %v259 = vpop.f32.mrf.mxu0
      %v260 = vadd.f32 0.0, %v259
      %v261 = vpop.f32.mrf.mxu0
      %262 = vmatprep.mubr.f32.mxu0 0.0
      %263 = vmatmul.mubr.f32.gmra.mxu0 %v134
      %v264 = vpop.f32.mrf.mxu0
      %v265 = vadd.f32 0.0, %v264
      %v266 = vpop.f32.mrf.mxu0
      %267 = vmatprep.mubr.f32.mxu0 0.0
      %268 = vmatmul.mubr.f32.gmra.mxu0 %v135
      %v269 = vpop.f32.mrf.mxu0
      %v270 = vadd.f32 0.0, %v269
      %v271 = vpop.f32.mrf.mxu0
      %272 = vmatprep.mubr.f32.mxu0 0.0
      %273 = vmatmul.mubr.f32.gmra.mxu0 %v136
      %v274 = vpop.f32.mrf.mxu0
      %v275 = vadd.f32 0.0, %v274
      %v276 = vpop.f32.mrf.mxu0
      %277 = vmatprep.mubr.f32.mxu0 0.0
      %278 = vmatmul.mubr.f32.gmra.mxu0 %v137
      %v279 = vpop.f32.mrf.mxu0
      %v280 = vadd.f32 0.0, %v279
      %v281 = vpop.f32.mrf.mxu0
      %282 = vmatprep.mubr.f32.mxu0 0.0
      %283 = vmatmul.mubr.f32.gmra.mxu0 %v138
      %v284 = vpop.f32.mrf.mxu0
      %v285 = vadd.f32 0.0, %v284
      %v286 = vpop.f32.mrf.mxu0
      %287 = vmatprep.mubr.f32.mxu0 0.0
      %288 = vmatmul.mubr.f32.gmra.mxu0 %v139
      %v289 = vpop.f32.mrf.mxu0
      %v290 = vadd.f32 0.0, %v289
      %v291 = vpop.f32.mrf.mxu0
      %292 = vmatprep.mubr.f32.mxu0 0.0
      %293 = vmatmul.mubr.f32.gmra.mxu0 %v140
      %v294 = vpop.f32.mrf.mxu0
      %v295 = vadd.f32 0.0, %v294
      %v296 = vpop.f32.mrf.mxu0
      %297 = vmatprep.mubr.f32.mxu0 0.0
      %298 = vmatmul.mubr.f32.gmra.mxu0 %v141
      %v299 = vpop.f32.mrf.mxu0
      %v300 = vadd.f32 0.0, %v299
      %v301 = vpop.f32.mrf.mxu0
      %302 = vdwg.mxu0
      %v303 = vadd.f32 %v110, %v225
      %v304 = vadd.f32 %v111, %v230
      %v305 = vadd.f32 %v112, %v235
      %v306 = vadd.f32 %v113, %v240
      %v307 = vadd.f32 %v114, %v245
      %v308 = vadd.f32 %v115, %v250
      %v309 = vadd.f32 %v116, %v255
      %v310 = vadd.f32 %v117, %v260
      %v311 = vadd.f32 %v118, %v265
      %v312 = vadd.f32 %v119, %v270
      %v313 = vadd.f32 %v120, %v275
      %v314 = vadd.f32 %v121, %v280
      %v315 = vadd.f32 %v122, %v285
      %v316 = vadd.f32 %v123, %v290
      %v317 = vadd.f32 %v124, %v295
      %v318 = vadd.f32 %v125, %v300
      %319 = vst [vmem:[#allocation2] sm:$0xff] %v303
      %320 = vst [vmem:[#allocation2 + $0x8] sm:$0xff] %v304
      %321 = vst [vmem:[#allocation2 + $0x10] sm:$0xff] %v305
      %322 = vst [vmem:[#allocation2 + $0x18] sm:$0xff] %v306
      %323 = vst [vmem:[#allocation2 + $0x20] sm:$0xff] %v307
      %324 = vst [vmem:[#allocation2 + $0x28] sm:$0xff] %v308
      %325 = vst [vmem:[#allocation2 + $0x30] sm:$0xff] %v309
      %326 = vst [vmem:[#allocation2 + $0x38] sm:$0xff] %v310
      %327 = vst [vmem:[#allocation2 + $0x40] sm:$0xff] %v311
      %328 = vst [vmem:[#allocation2 + $0x48] sm:$0xff] %v312
      %329 = vst [vmem:[#allocation2 + $0x50] sm:$0xff] %v313
      %330 = vst [vmem:[#allocation2 + $0x58] sm:$0xff] %v314
      %331 = vst [vmem:[#allocation2 + $0x60] sm:$0xff] %v315
      %332 = vst [vmem:[#allocation2 + $0x68] sm:$0xff] %v316
      %333 = vst [vmem:[#allocation2 + $0x70] sm:$0xff] %v317
      %334 = vst [vmem:[#allocation2 + $0x78] sm:$0xff] %v318
    $region17: #{_gcn_forward_padded.3} parent=1 // pred_fallthru
      _
    // Predicated region
    $region18: #{_gcn_forward_padded.3} parent=1 // pred_check
      %p335 = pneg %p85
    $region19: #{_gcn_forward_padded.3} parent=1 // pred_check_branch
      %337 = sbr.rel (%p335) target = $region21
    $region20: #{_gcn_forward_padded.3} parent=1 // pred_region
      %v338 = vld [vmem:[#allocation2] sm:$0xff]
      %v339 = vld [vmem:[#allocation2 + $0x8] sm:$0xff]
      %v340 = vld [vmem:[#allocation2 + $0x10] sm:$0xff]
      %v341 = vld [vmem:[#allocation2 + $0x18] sm:$0xff]
      %v342 = vld [vmem:[#allocation2 + $0x20] sm:$0xff]
      %v343 = vld [vmem:[#allocation2 + $0x28] sm:$0xff]
      %v344 = vld [vmem:[#allocation2 + $0x30] sm:$0xff]
      %v345 = vld [vmem:[#allocation2 + $0x38] sm:$0xff]
      %v346 = vld [vmem:[#allocation2 + $0x40] sm:$0xff]
      %v347 = vld [vmem:[#allocation2 + $0x48] sm:$0xff]
      %v348 = vld [vmem:[#allocation2 + $0x50] sm:$0xff]
      %v349 = vld [vmem:[#allocation2 + $0x58] sm:$0xff]
      %v350 = vld [vmem:[#allocation2 + $0x60] sm:$0xff]
      %v351 = vld [vmem:[#allocation2 + $0x68] sm:$0xff]
      %v352 = vld [vmem:[#allocation2 + $0x70] sm:$0xff]
      %v353 = vld [vmem:[#allocation2 + $0x78] sm:$0xff]
      %v354 = vmax.f32 %v338, 0.0
      %v355 = vmax.f32 %v339, 0.0
      %v356 = vmax.f32 %v340, 0.0
      %v357 = vmax.f32 %v341, 0.0
      %v358 = vmax.f32 %v342, 0.0
      %v359 = vmax.f32 %v343, 0.0
      %v360 = vmax.f32 %v344, 0.0
      %v361 = vmax.f32 %v345, 0.0
      %v362 = vmax.f32 %v346, 0.0
      %v363 = vmax.f32 %v347, 0.0
      %v364 = vmax.f32 %v348, 0.0
      %v365 = vmax.f32 %v349, 0.0
      %v366 = vmax.f32 %v350, 0.0
      %v367 = vmax.f32 %v351, 0.0
      %v368 = vmax.f32 %v352, 0.0
      %v369 = vmax.f32 %v353, 0.0
      %370 = vst [vmem:[#allocation6] sm:$0xff] %v354
      %371 = vst [vmem:[#allocation6 + $0x8] sm:$0xff] %v355
      %372 = vst [vmem:[#allocation6 + $0x10] sm:$0xff] %v356
      %373 = vst [vmem:[#allocation6 + $0x18] sm:$0xff] %v357
      %374 = vst [vmem:[#allocation6 + $0x20] sm:$0xff] %v358
      %375 = vst [vmem:[#allocation6 + $0x28] sm:$0xff] %v359
      %376 = vst [vmem:[#allocation6 + $0x30] sm:$0xff] %v360
      %377 = vst [vmem:[#allocation6 + $0x38] sm:$0xff] %v361
      %378 = vst [vmem:[#allocation6 + $0x40] sm:$0xff] %v362
      %379 = vst [vmem:[#allocation6 + $0x48] sm:$0xff] %v363
      %380 = vst [vmem:[#allocation6 + $0x50] sm:$0xff] %v364
      %381 = vst [vmem:[#allocation6 + $0x58] sm:$0xff] %v365
      %382 = vst [vmem:[#allocation6 + $0x60] sm:$0xff] %v366
      %383 = vst [vmem:[#allocation6 + $0x68] sm:$0xff] %v367
      %384 = vst [vmem:[#allocation6 + $0x70] sm:$0xff] %v368
      %385 = vst [vmem:[#allocation6 + $0x78] sm:$0xff] %v369
    $region21: #{_gcn_forward_padded.3} parent=1 // pred_fallthru
      _
    // Predicated region
    $region22: #{_gcn_forward_padded.3} parent=1 // pred_check
      _
    $region23: #{_gcn_forward_padded.3} parent=1 // pred_check_branch
      %387 = sbr.rel (0) target = $region25
    $region24: #{_gcn_forward_padded.3} parent=1 // pred_region
      %s389 = ssub.s32 2048, 2048
      %390 = vsyncadd [#allocation7], %s389
      %s391 = sshll.u32 [#allocation6], 4
      %s392 = int_to_ptr.vmem [resolvable:$true] %s391
      %397 = dma.vmem_to_hbm [thread:$0]  %s392, 2048, %s4, [#allocation7], 128, 128, 8
    $region25: #{_gcn_forward_padded.3} parent=1 // pred_fallthru
      _
    // Predicated region
    $region26: #{_gcn_forward_padded.3} parent=1 // pred_check
      _
    $region27: #{_gcn_forward_padded.3} parent=1 // pred_check_branch
      %399 = sbr.rel (0) target = $region29
    $region28: #{_gcn_forward_padded.3} parent=1 // pred_region
      %400 = dma.done [#allocation7], 2048
    $region29: #{_gcn_forward_padded.3} parent=1 // pred_fallthru
      _
    %401 = vsyncpa [#allocation7], 1

</llo_original>
